<compile_context>
chip_gen: v6e
topology: v6e:2x2x1
jax: 0.10.0
libtpu: 0.0.40
codegen_flags: <defaults>
</compile_context>

<pallas_src>
import functools

import jax
import jax.numpy as jnp
from jax.experimental import pallas as pl
from jax.experimental.pallas import tpu as pltpu

_EPS = 1e-5
# Target native-dtype bytes for a (C_TILE, HW) block (keeps per-step VMEM to a
# few MiB even with in/out double-buffering + f32 temps).
_CHANNEL_TILE_BYTES = 2 * 1024 * 1024


def _vmem_limit_bytes():
    """Generation-aware scoped-VMEM limit, leaving headroom for compiler scratch."""
    cap = 128 * 1024 * 1024
    try:
        cap = int(pltpu.get_tpu_info().vmem_capacity_bytes)
    except Exception:  # no TPU / interpret mode / older API surface
        pass
    # ~60% of physical: ~38 MiB on v7x (64 MiB/TC), ~76 MiB on v5e/v6e (128 MiB).
    return max(32 * 1024 * 1024, min(96 * 1024 * 1024, (cap * 3) // 5))


def _pick_channel_tile(c, hw, itemsize, budget=_CHANNEL_TILE_BYTES):
    """Largest channel tile that (a) is legal for the (8,128) layout rule
    (tile % 8 == 0 or tile == c), (b) divides c exactly, and (c) keeps the
    native-dtype (tile, hw) block under `budget` bytes when possible."""
    if c % 8 != 0 or c * hw * itemsize <= budget:
        return c
    divisors = [d for d in range(8, c, 8) if c % d == 0]
    fitting = [d for d in divisors if d * hw * itemsize <= budget]
    if fitting:
        return max(fitting)
    return min(divisors) if divisors else c


# ----------------------------------------------------------------------------
# Pass 1: BN-half batch statistics (per-channel sum / sum-of-squares over N,HW)
# ----------------------------------------------------------------------------
def _bn_stats_kernel(x_ref, sum_ref, sumsq_ref):
    # grid = (channel_tiles ["parallel"], N ["arbitrary" accumulation axis]).
    @pl.when(pl.program_id(1) == 0)
    def _init():
        sum_ref[...] = jnp.zeros_like(sum_ref)
        sumsq_ref[...] = jnp.zeros_like(sumsq_ref)

    x = x_ref[...].astype(jnp.float32)                       # (C2_TILE, HW)
    sum_ref[...] += jnp.sum(x, axis=-1, keepdims=True)       # (C2_TILE, 1)
    sumsq_ref[...] += jnp.sum(x * x, axis=-1, keepdims=True) # (C2_TILE, 1)


# ----------------------------------------------------------------------------
# Pass 2: fused IN(+affine)+ReLU / BN(folded scale-shift)+ReLU per block
# ----------------------------------------------------------------------------
def _ibn_norm_kernel(x_ref, p_ref, o_ref, *, c1, c_tile, hw):
    p = p_ref[...]                                           # (4, C_TILE, 1) f32
    g_in, b_in, s_bn, t_bn = p[0], p[1], p[2], p[3]          # each (C_TILE, 1)

    inv_hw = 1.0 / float(hw)
    # One-pass moments: single sweep over the block (sum + sumsq), clamped
    # variance feeding rsqrt.  The f32 widen used for the reductions is not
    # reused in the epilogue, so its live range ends here.
    xw = x_ref[...].astype(jnp.float32)                      # (C_TILE, HW)
    mean = jnp.sum(xw, axis=-1, keepdims=True) * inv_hw
    ex2 = jnp.sum(xw * xw, axis=-1, keepdims=True) * inv_hw
    var = jnp.maximum(ex2 - mean * mean, 0.0)
    scale_in = jax.lax.rsqrt(var + _EPS) * g_in              # fold gamma into 1/std

    c0 = pl.program_id(1) * c_tile                           # channel-tile offset
    cidx = c0 + jax.lax.broadcasted_iota(jnp.int32, (c_tile, 1), 0)
    is_in = cidx < c1
    scale = jnp.where(is_in, scale_in, s_bn)                 # (C_TILE, 1)
    shift = jnp.where(is_in, b_in - mean * scale_in, t_bn)   # (C_TILE, 1)

    # Re-read/re-widen x in the epilogue (cheap VPU cast) instead of keeping
    # the fat f32 copy live; single FMA + max per element.
    o_ref[...] = jnp.maximum(
        x_ref[...].astype(jnp.float32) * scale + shift, 0.0).astype(o_ref.dtype)


# ----------------------------------------------------------------------------
# Wrapper
# ----------------------------------------------------------------------------
def ibn_forward(x, gamma_in, beta_in, gamma_bn, beta_bn):
    """x: (N, C, H, W).  Returns (N, C, H, W) in x.dtype."""
    n, c, h, w = x.shape
    c1 = c // 2
    c2 = c - c1
    hw = h * w
    itemsize = jnp.dtype(x.dtype).itemsize
    vmem_limit = _vmem_limit_bytes()

    x3 = x.reshape(n, c, hw)                                 # free view

    # --- Pass 1: BN-half batch statistics ------------------------------------
    if c1 == c2:
        c2_tile = _pick_channel_tile(c2, hw, itemsize)
        n_ct2 = c2 // c2_tile
        x4 = x.reshape(n, 2, c1, hw)                         # free view; BN half = index 1
        bn_sum, bn_sumsq = pl.pallas_call(
            _bn_stats_kernel,
            out_shape=(jax.ShapeDtypeStruct((c2, 1), jnp.float32),
                       jax.ShapeDtypeStruct((c2, 1), jnp.float32)),
            grid_spec=pltpu.PrefetchScalarGridSpec(
                num_scalar_prefetch=0,
                grid=(n_ct2, n),
                in_specs=[
                    pl.BlockSpec((None, None, c2_tile, hw),
                                 lambda j, i: (i, 1, j, 0)),
                ],
                out_specs=[
                    pl.BlockSpec((c2_tile, 1), lambda j, i: (j, 0)),
                    pl.BlockSpec((c2_tile, 1), lambda j, i: (j, 0)),
                ],
            ),
            compiler_params=pltpu.CompilerParams(
                dimension_semantics=("parallel", "arbitrary"),
                vmem_limit_bytes=vmem_limit),
        )(x4)
        bn_sum = bn_sum[:, 0]
        bn_sumsq = bn_sumsq[:, 0]
    else:
        # TODO(synk): odd channel split — BN-half stats via fused XLA reduction
        # (slice fuses into the reduce; if it doesn't, it costs an extra copy).
        xb = x3[:, c1:, :].astype(jnp.float32)
        bn_sum = jnp.sum(xb, axis=(0, 2))
        bn_sumsq = jnp.sum(xb * xb, axis=(0, 2))

    cnt = float(n * hw)
    bn_mean = bn_sum / cnt
    # One-pass E[x^2]-E[x]^2 in f32 (clamped); fine for post-conv activations.
    bn_var = jnp.maximum(bn_sumsq / cnt - bn_mean * bn_mean, 0.0)
    bn_scale = gamma_bn.astype(jnp.float32) * jax.lax.rsqrt(bn_var + _EPS)
    bn_shift = beta_bn.astype(jnp.float32) - bn_mean * bn_scale

    # Pack per-channel parameters (padded to full C) into one (4, C, 1) array:
    # rows = [gamma_in, beta_in, bn_scale, bn_shift]; unused halves are zeros.
    z1 = jnp.zeros((c1,), jnp.float32)
    z2 = jnp.zeros((c2,), jnp.float32)
    params = jnp.stack([
        jnp.concatenate([gamma_in.astype(jnp.float32), z2]),
        jnp.concatenate([beta_in.astype(jnp.float32), z2]),
        jnp.concatenate([z1, bn_scale]),
        jnp.concatenate([z1, bn_shift]),
    ]).reshape(4, c, 1)

    # --- Pass 2: fused normalize + ReLU over (sample, channel-tile) blocks ---
    c_tile = _pick_channel_tile(c, hw, itemsize)
    n_ct = c // c_tile

    # VMEM footprint sanity: in/out double-buffered native blocks + f32 temps.
    block_bytes = c_tile * hw * itemsize
    footprint = 4 * block_bytes + 3 * c_tile * hw * 4
    if footprint > vmem_limit:
        # TODO(synk): HW-chunked IN-stats path for segmentation-scale feature maps.
        raise ValueError(
            f"IBN pass-2 block footprint ({footprint / 2**20:.1f} MiB) exceeds "
            f"scoped VMEM ({vmem_limit / 2**20:.1f} MiB); spatial tiling not "
            f"implemented.")

    out3 = pl.pallas_call(
        functools.partial(_ibn_norm_kernel, c1=c1, c_tile=c_tile, hw=hw),
        out_shape=jax.ShapeDtypeStruct((n, c, hw), x.dtype),
        grid_spec=pltpu.PrefetchScalarGridSpec(
            num_scalar_prefetch=0,
            grid=(n, n_ct),
            in_specs=[
                pl.BlockSpec((None, c_tile, hw), lambda i, j: (i, j, 0)),
                pl.BlockSpec((4, c_tile, 1), lambda i, j: (0, j, 0)),
            ],
            out_specs=pl.BlockSpec((None, c_tile, hw), lambda i, j: (i, j, 0)),
        ),
        compiler_params=pltpu.CompilerParams(
            dimension_semantics=("parallel", "parallel"),
            vmem_limit_bytes=vmem_limit),
    )(x3, params)

    return out3.reshape(n, c, h, w)


# ----------------------------------------------------------------------------
# Pure-JAX reference (for sanity checking the kernels)
# ----------------------------------------------------------------------------
def ibn_reference(x, gamma_in, beta_in, gamma_bn, beta_bn):
    n, c, h, w = x.shape
    half = c // 2
    x1, x2 = x[:, :half], x[:, half:]

    m1 = jnp.mean(x1, axis=(2, 3), keepdims=True)
    v1 = jnp.mean((x1 - m1) ** 2, axis=(2, 3), keepdims=True)
    y1 = (x1 - m1) * jax.lax.rsqrt(v1 + _EPS)
    y1 = y1 * gamma_in[None, :, None, None] + beta_in[None, :, None, None]
    y1 = jnp.maximum(y1, 0.0)

    m2 = jnp.mean(x2, axis=(0, 2, 3), keepdims=True)
    v2 = jnp.mean((x2 - m2) ** 2, axis=(0, 2, 3), keepdims=True)
    y2 = (x2 - m2) * jax.lax.rsqrt(v2 + _EPS)
    y2 = y2 * gamma_bn[None, :, None, None] + beta_bn[None, :, None, None]
    y2 = jnp.maximum(y2, 0.0)

    return jnp.concatenate([y1, y2], axis=1)


if __name__ == "__main__":
    # IBN(planes=4) on x of shape (2, 4, 16, 16)  -> half = 2
    N, C, H, W = 2, 4, 16, 16
    half1 = C // 2
    half2 = C - half1

    key = jax.random.PRNGKey(0)
    kx, kg1, kb1, kg2, kb2 = jax.random.split(key, 5)

    x = jax.random.normal(kx, (N, C, H, W), dtype=jnp.float32)
    # Affine parameters perturbed around PyTorch defaults (1 / 0).
    gamma_in = 1.0 + 0.1 * jax.random.normal(kg1, (half1,), dtype=jnp.float32)
    beta_in = 0.1 * jax.random.normal(kb1, (half1,), dtype=jnp.float32)
    gamma_bn = 1.0 + 0.1 * jax.random.normal(kg2, (half2,), dtype=jnp.float32)
    beta_bn = 0.1 * jax.random.normal(kb2, (half2,), dtype=jnp.float32)

    out = ibn_forward(x, gamma_in, beta_in, gamma_bn, beta_bn)
    out = jax.block_until_ready(out)

    ref = ibn_reference(x, gamma_in, beta_in, gamma_bn, beta_bn)
    assert out.shape == (N, C, H, W)
    assert jnp.allclose(out, ref, atol=1e-4, rtol=1e-4), "mismatch vs reference"

    print("KERNEL_OK")
</pallas_src>

<mosaic_0001>
module attributes {stable_mosaic.version = 11 : i64} {
  func.func @_bn_stats_kernel(%arg0: i32, %arg1: i32, %arg2: memref<1x1x2x256xf32, #tpu.memory_space<vmem>>, %arg3: memref<2x1xf32, #tpu.memory_space<vmem>>, %arg4: memref<2x1xf32, #tpu.memory_space<vmem>>) attributes {dimension_semantics = [#tpu.dimension_semantics<parallel>, #tpu.dimension_semantics<arbitrary>], iteration_bounds = array<i64: 1, 2>, scalar_prefetch = 0 : i64, scratch_operands = 0 : i64, tpu.core_type = #tpu.core_type<tc>, window_params = [{transform_indices = @transform_0, window_bounds = array<i64: 1, 1, 2, 256>}, {transform_indices = @transform_1, window_bounds = array<i64: 2, 1>}, {transform_indices = @transform_2, window_bounds = array<i64: 2, 1>}]} {
    %c0_i32 = arith.constant 0 : i32
    %0 = arith.cmpi eq, %arg1, %c0_i32 : i32
    %1 = arith.extui %0 : i1 to i32
    %c0_i32_0 = arith.constant 0 : i32
    %2 = arith.cmpi ne, %1, %c0_i32_0 : i32
    scf.if %2 {
      %cst_13 = arith.constant 0.000000e+00 : f32
      %16 = vector.broadcast %cst_13 : f32 to vector<2x1xf32>
      %c0_14 = arith.constant 0 : index
      %c0_15 = arith.constant 0 : index
      %17 = vector.load %arg3[%c0_14, %c0_15] : memref<2x1xf32, #tpu.memory_space<vmem>>, vector<2x1xf32>
      tpu.vector_store %arg3[%c0_14, %c0_15], %16 {strides = array<i32>} : memref<2x1xf32, #tpu.memory_space<vmem>>, vector<2x1xf32>,
      %cst_16 = arith.constant 0.000000e+00 : f32
      %18 = vector.broadcast %cst_16 : f32 to vector<2x1xf32>
      %c0_17 = arith.constant 0 : index
      %c0_18 = arith.constant 0 : index
      %19 = vector.load %arg4[%c0_17, %c0_18] : memref<2x1xf32, #tpu.memory_space<vmem>>, vector<2x1xf32>
      tpu.vector_store %arg4[%c0_17, %c0_18], %18 {strides = array<i32>} : memref<2x1xf32, #tpu.memory_space<vmem>>, vector<2x1xf32>,
    } else {
    }
    %c0 = arith.constant 0 : index
    %c0_1 = arith.constant 0 : index
    %c0_2 = arith.constant 0 : index
    %c0_3 = arith.constant 0 : index
    %3 = vector.load %arg2[%c0, %c0_1, %c0_2, %c0_3] : memref<1x1x2x256xf32, #tpu.memory_space<vmem>>, vector<1x1x2x256xf32>
    %4 = vector.shape_cast %3 : vector<1x1x2x256xf32> to vector<2x256xf32>
    %c0_4 = arith.constant 0 : index
    %c0_5 = arith.constant 0 : index
    %5 = vector.load %arg3[%c0_4, %c0_5] : memref<2x1xf32, #tpu.memory_space<vmem>>, vector<2x1xf32>
    %cst = arith.constant dense<0.000000e+00> : vector<2xf32>
    %6 = vector.multi_reduction <add>, %4, %cst [1] : vector<2x256xf32> to vector<2xf32>
    %7 = vector.shape_cast %6 : vector<2xf32> to vector<2x1xf32>
    %8 = arith.addf %5, %7 : vector<2x1xf32>
    %c0_6 = arith.constant 0 : index
    %c0_7 = arith.constant 0 : index
    %9 = vector.load %arg3[%c0_6, %c0_7] : memref<2x1xf32, #tpu.memory_space<vmem>>, vector<2x1xf32>
    tpu.vector_store %arg3[%c0_6, %c0_7], %8 {strides = array<i32>} : memref<2x1xf32, #tpu.memory_space<vmem>>, vector<2x1xf32>,
    %c0_8 = arith.constant 0 : index
    %c0_9 = arith.constant 0 : index
    %10 = vector.load %arg4[%c0_8, %c0_9] : memref<2x1xf32, #tpu.memory_space<vmem>>, vector<2x1xf32>
    %11 = arith.mulf %4, %4 : vector<2x256xf32>
    %cst_10 = arith.constant dense<0.000000e+00> : vector<2xf32>
    %12 = vector.multi_reduction <add>, %11, %cst_10 [1] : vector<2x256xf32> to vector<2xf32>
    %13 = vector.shape_cast %12 : vector<2xf32> to vector<2x1xf32>
    %14 = arith.addf %10, %13 : vector<2x1xf32>
    %c0_11 = arith.constant 0 : index
    %c0_12 = arith.constant 0 : index
    %15 = vector.load %arg4[%c0_11, %c0_12] : memref<2x1xf32, #tpu.memory_space<vmem>>, vector<2x1xf32>
    tpu.vector_store %arg4[%c0_11, %c0_12], %14 {strides = array<i32>} : memref<2x1xf32, #tpu.memory_space<vmem>>, vector<2x1xf32>,
    return
  }
  func.func @transform_0(%arg0: i32, %arg1: i32) -> (i32, i32, i32, i32) {
    %c1_i32 = arith.constant 1 : i32
    %c0_i32 = arith.constant 0 : i32
    %c0_i32_0 = arith.constant 0 : i32
    return %arg1, %c1_i32, %arg0, %c0_i32 : i32, i32, i32, i32
  }
  func.func @transform_1(%arg0: i32, %arg1: i32) -> (i32, i32) {
    %c0_i32 = arith.constant 0 : i32
    %c0_i32_0 = arith.constant 0 : i32
    return %arg0, %c0_i32 : i32, i32
  }
  func.func @transform_2(%arg0: i32, %arg1: i32) -> (i32, i32) {
    %c0_i32 = arith.constant 0 : i32
    %c0_i32_0 = arith.constant 0 : i32
    return %arg0, %c0_i32 : i32, i32
  }
}

</mosaic_0001>

<llo_original>
// kernel: tpu_custom_call.1
$region0: #{tpu_custom_call.1}
  #allocation0 [shape = 'u32[]', space=smem, size = 0x4, offset = 0x4, fixed_abs, tag = 'smem constant byte address 0x4 - core index']
  #allocation1 [shape = 'u32[144,128]{1,0:T(1,128)}', space=vmem, size = 0x12000, scoped, tag = 'internal scratch']
  %s0 = inlined_call_operand.hbm [shape: f32[2,2,2,256], index: 0, kind: input, shape index: {}]
  %s1 = inlined_call_operand.vmem [shape: f32[2,1], index: 1, kind: output, shape index: {0}]
  %s2 = inlined_call_operand.vmem [shape: f32[2,1], index: 2, kind: output, shape index: {1}]
  %3 = xla_tuple %s1, %s2
  %s4 = sld [smem:[#allocation0]]
  $region53: #{tpu_custom_call.1} parent=0
    _
  %s6 = ssub.s32 1, %s4
  %s7 = scalar_select 0, %s6, %s4
  $region1: #{tpu_custom_call.1} parent=0
    #allocation2 [shape = 'u8[4096]{0}', space=vmem, size = 0x1000, scoped, tag = 'input window, operand 0']
    #allocation3 [shape = 's32[2]{0}', space=sflag, size = 0x8, scoped, tag = 'scoped memory for tpu_custom_call.1']
    %8 = vsyncpa [#allocation3], 0
    %s9 = scalar_lea.sflag [#allocation3], 1
    %10 = vsyncpa %s9, 0
    loop: start=0, step=1, limit=4
    $region2: #{tpu_custom_call.1} parent=1 // loop_pre_header
      _
    $region3: #{tpu_custom_call.1} parent=1 // loop_header
      %s12 = sphi 0, %s16
      %p13 = scmp.ge.s32.totalorder %s12, 4
      %s19 = sphi 0, %s31
      %s20 = sphi 0, %s27
      %s21 = sphi 0, %s19
      %s22 = sphi 0, %s20
      %s23 = sphi 0, %s21
      %s24 = sphi 0, %s22
      %s36 = sphi 0, %s38
      %s39 = sphi 0, %s36
      %s40 = sphi 0, %s39
      %s56 = sphi 0, %s40
      %s62 = sphi 0, %s64
      %s65 = sphi 0, %s62
      %s66 = sphi 0, %s65
      %s82 = sphi 0, %s66
      %s88 = sphi 0, %s90
      %s91 = sphi 0, %s88
      %s92 = sphi 0, %s91
      %s108 = sphi 0, %s92
    $region4: #{tpu_custom_call.1} parent=1 // loop_header_branch
      %15 = sbr.rel (%p13) target = $region8
    $region5: #{tpu_custom_call.1} parent=1 // loop_body
      %s17 = ssub.s32 %s12, 1
      %s18 = ssub.s32 %s12, 2
      %s25 = sadd.s32 1, %s20
      %p26 = scmp.ge.s32.totalorder %s25, 2
      %s27 = scalar_select %p26, 0, %s25
      %s28 = sadd.s32 1, %s19
      %s29 = scalar_select %p26, %s28, %s19
      %p30 = scmp.ge.s32.totalorder %s29, 1
      %s31 = scalar_select %p30, 0, %s29
      %s32 = ssub.s32 %s20, %s27
      %s33 = ssub.s32 %s19, %s31
      %s34 = sor.u32 %s32, %s33
      %p35 = scmp.eq.s32.totalorder %s34, 0
      %s37 = sadd.s32 %s36, 1
      %s38 = scalar_select %p35, %s36, %s37
      %p41 = pneg %p35
      %p42 = scmp.eq.s32.totalorder %s12, 1
      %p43 = por %p41, %p42
      %p44 = scmp.ne.s32.totalorder %s36, %s39
      %p45 = scmp.eq.s32.totalorder %s12, 0
      %p46 = por %p44, %p45
      %p47 = scmp.ne.s32.totalorder %s36, %s39
      %p48 = scmp.eq.s32.totalorder %s17, 1
      %p49 = por %p47, %p48
      %p50 = scmp.ne.s32.totalorder %s39, %s40
      %p51 = scmp.eq.s32.totalorder %s17, 0
      %p52 = por %p50, %p51
      %p53 = scmp.ne.s32.totalorder %s39, %s40
      %p54 = scmp.eq.s32.totalorder %s18, 1
      %p55 = por %p53, %p54
      %p57 = scmp.ne.s32.totalorder %s40, %s56
      %p58 = scmp.eq.s32.totalorder %s18, 0
      %p59 = por %p57, %p58
      %s60 = ssub.s32 %s19, %s31
      %p61 = scmp.eq.s32.totalorder %s60, 0
      %s63 = sadd.s32 %s62, 1
      %s64 = scalar_select %p61, %s62, %s63
      %p67 = pneg %p61
      %p68 = scmp.eq.s32.totalorder %s12, 1
      %p69 = por %p67, %p68
      %p70 = scmp.ne.s32.totalorder %s62, %s65
      %p71 = scmp.eq.s32.totalorder %s12, 0
      %p72 = por %p70, %p71
      %p73 = scmp.ne.s32.totalorder %s62, %s65
      %p74 = scmp.eq.s32.totalorder %s17, 1
      %p75 = por %p73, %p74
      %p76 = scmp.ne.s32.totalorder %s65, %s66
      %p77 = scmp.eq.s32.totalorder %s17, 0
      %p78 = por %p76, %p77
      %p79 = scmp.ne.s32.totalorder %s65, %s66
      %p80 = scmp.eq.s32.totalorder %s18, 1
      %p81 = por %p79, %p80
      %p83 = scmp.ne.s32.totalorder %s66, %s82
      %p84 = scmp.eq.s32.totalorder %s18, 0
      %p85 = por %p83, %p84
      %s86 = ssub.s32 %s19, %s31
      %p87 = scmp.eq.s32.totalorder %s86, 0
      %s89 = sadd.s32 %s88, 1
      %s90 = scalar_select %p87, %s88, %s89
      %p93 = pneg %p87
      %p94 = scmp.eq.s32.totalorder %s12, 1
      %p95 = por %p93, %p94
      %p96 = scmp.ne.s32.totalorder %s88, %s91
      %p97 = scmp.eq.s32.totalorder %s12, 0
      %p98 = por %p96, %p97
      %p99 = scmp.ne.s32.totalorder %s88, %s91
      %p100 = scmp.eq.s32.totalorder %s17, 1
      %p101 = por %p99, %p100
      %p102 = scmp.ne.s32.totalorder %s91, %s92
      %p103 = scmp.eq.s32.totalorder %s17, 0
      %p104 = por %p102, %p103
      %p105 = scmp.ne.s32.totalorder %s91, %s92
      %p106 = scmp.eq.s32.totalorder %s18, 1
      %p107 = por %p105, %p106
      %p109 = scmp.ne.s32.totalorder %s92, %s108
      %p110 = scmp.eq.s32.totalorder %s18, 0
      %p111 = por %p109, %p110
      %p112 = scmp.le.s32.totalorder 1, %s12
      %p113 = scmp.lt.s32.totalorder %s12, 3
      %p114 = pnand %p112, %p113
      %p115 = pneg %p114
      // Predicated region
      $region9: #{tpu_custom_call.1} parent=5 // pred_check
        _
      $region10: #{tpu_custom_call.1} parent=5 // pred_check_branch
        %117 = sbr.rel (%p114) target = $region12
      $region11: #{tpu_custom_call.1} parent=5 // pred_region
        %s118 = ssub.s32 %s12, 1
      $region12: #{tpu_custom_call.1} parent=5 // pred_fallthru
        _
      %p119 = scmp.lt.s32.totalorder %s12, 2
      // Predicated region
      $region13: #{tpu_custom_call.1} parent=5 // pred_check
        %p120 = pneg %p119
      $region14: #{tpu_custom_call.1} parent=5 // pred_check_branch
        %122 = sbr.rel (%p120) target = $region16
      $region15: #{tpu_custom_call.1} parent=5 // pred_region
        // Predicated region
        $region17: #{tpu_custom_call.1} parent=15 // pred_check
          %p123 = pneg %p46
        $region18: #{tpu_custom_call.1} parent=15 // pred_check_branch
          %125 = sbr.rel (%p123) target = $region20
        $region19: #{tpu_custom_call.1} parent=15 // pred_region
          %s126 = sand.u32 %s36, 1
          %s127 = scalar_lea.sflag [#allocation3], %s126
          %s128 = sand.u32 %s36, 1
          %s129 = smul.addr %s128, 4
          %s130 = scalar_lea.vmem [#allocation2], %s129
          %s132 = ssub.s32 64, 64
          %133 = vsyncadd %s127, %s132
          %s134 = smul.addr %s19, 2
          %s135 = sadd.s32 %s134, 2
          %s136 = smul.addr %s20, 4
          %s137 = sadd.s32 %s135, %s136
          %s138 = smul.addr %s137, 32
          %s139 = scalar_lea.hbm %s0, %s138
          %s141 = sshll.u32 %s130, 4
          %s142 = int_to_ptr.vmem [resolvable:$true] %s141
          %144 = dma.hbm_to_vmem [thread:$0]  %s139, 64, %s142, %s127
        $region20: #{tpu_custom_call.1} parent=15 // pred_fallthru
          _
      $region16: #{tpu_custom_call.1} parent=5 // pred_fallthru
        _
      %p145 = scmp.le.s32.totalorder 1, %s12
      %p146 = scmp.lt.s32.totalorder %s12, 3
      %p147 = pnand %p145, %p146
      %p148 = pneg %p147
      // Predicated region
      $region21: #{tpu_custom_call.1} parent=5 // pred_check
        _
      $region22: #{tpu_custom_call.1} parent=5 // pred_check_branch
        %150 = sbr.rel (%p147) target = $region24
      $region23: #{tpu_custom_call.1} parent=5 // pred_region
        %s151 = ssub.s32 %s12, 1
        %s152 = sand.u32 %s39, 1
        %s153 = scalar_lea.sflag [#allocation3], %s152
        %s154 = sand.u32 %s39, 1
        %s155 = smul.addr %s154, 4
        %s156 = scalar_lea.vmem [#allocation2], %s155
        // Predicated region
        $region25: #{tpu_custom_call.1} parent=23 // pred_check
          %p157 = pneg %p52
        $region26: #{tpu_custom_call.1} parent=23 // pred_check_branch
          %159 = sbr.rel (%p157) target = $region28
        $region27: #{tpu_custom_call.1} parent=23 // pred_region
          %160 = dma.done %s153, 64
        $region28: #{tpu_custom_call.1} parent=23 // pred_fallthru
          _
        %s161 = sand.u32 %s39, 1
        %s162 = scalar_lea.sflag [#allocation3], %s161
        %s163 = sand.u32 %s39, 1
        %s164 = smul.addr %s163, 4
        %s165 = scalar_lea.vmem [#allocation2], %s164
        %p166 = pneg %p52
        %p167 = pneg %p49
        %p168 = pneg %p78
        %p169 = pneg %p75
        %p170 = scmp.lt.s32.totalorder %s21, 0
        %s171 = scalar_select %p170, %s21, 0
        %s172 = smul.addr %s171, 2
        %s173 = scalar_lea.vmem %s1, %s172
        %p174 = pneg %p104
        %p175 = pneg %p101
        %p176 = scmp.lt.s32.totalorder %s21, 0
        %s177 = scalar_select %p176, %s21, 0
        %s178 = smul.addr %s177, 2
        %s179 = scalar_lea.vmem %s2, %s178
        %p180 = scmp.lt.s32.totalorder %s21, 0
        %s181 = scalar_select %p180, %s21, 0
        %s182 = smul.addr %s181, 2
        %s183 = scalar_lea.vmem %s1, %s182
        %p184 = scmp.lt.s32.totalorder %s21, 0
        %s185 = scalar_select %p184, %s21, 0
        %s186 = smul.addr %s185, 2
        %s187 = scalar_lea.vmem %s2, %s186
        %p188 = scmp.eq.s32.totalorder %s22, 0
        // Predicated region
        $region29: #{tpu_custom_call.1} parent=23 // pred_check
          %p189 = pneg %p188
        $region30: #{tpu_custom_call.1} parent=23 // pred_check_branch
          %191 = sbr.rel (%p189) target = $region32
        $region31: #{tpu_custom_call.1} parent=23 // pred_region
          %vm192 = vcmask 1024
          %193 = vst.msk [vmem:[%s183] sm:$0x3] %vm192, 0.0
          %194 = vst.msk [vmem:[%s187] sm:$0x3] %vm192, 0.0
        $region32: #{tpu_custom_call.1} parent=23 // pred_fallthru
          _
        %v195 = vld [vmem:[%s156] sm:$0xf]
        %v196 = vld [vmem:[%s183] sm:$0x3]
        %v199 = vunpack.c.l.s4 1983009808
        %v200 = vunpack.c.0.s8 %v199
        %v201 = vlaneseq
        %v202 = vshrl.u32 %v201, 7
        %v203 = vsub.s32 %v200, %v202
        %v204 = vrot.slane %v195, %v203
        %v205 = vcombine.high %v204, %v204
        %vm208 = vcmask 1041408
        %v209 = vsel %vm208, %v204, 0.0
        %v210 = vsel %vm208, %v205, 0.0
        %v211 = vadd.f32 %v209, %v210
        %212 = vadd.xlane.f32.xlu0 %v211
        %v213 = vpop.xlane.xlu0 %212
        %v214 = vadd.f32 %v196, %v213
        %vm215 = vcmask 1024
        %216 = vst.msk [vmem:[%s183] sm:$0x3] %vm215, %v214
        %v217 = vld [vmem:[%s187] sm:$0x3]
        %v218 = vmul.f32 %v195, %v195
        %v221 = vunpack.c.l.s4 1983009808
        %v222 = vunpack.c.0.s8 %v221
        %v223 = vlaneseq
        %v224 = vshrl.u32 %v223, 7
        %v225 = vsub.s32 %v222, %v224
        %v226 = vrot.slane %v218, %v225
        %v227 = vcombine.high %v226, %v226
        %v230 = vsel %vm208, %v226, 0.0
        %v231 = vsel %vm208, %v227, 0.0
        %v232 = vadd.f32 %v230, %v231
        %233 = vadd.xlane.f32.xlu0 %v232
        %v234 = vpop.xlane.xlu0 %233
        %v235 = vadd.f32 %v217, %v234
        %236 = vst.msk [vmem:[%s187] sm:$0x3] %vm215, %v235
        %p237 = scmp.lt.s32.totalorder %s21, 0
        %s238 = scalar_select %p237, %s21, 0
        %s239 = smul.addr %s238, 2
        %s240 = scalar_lea.vmem %s1, %s239
        %p241 = scmp.lt.s32.totalorder %s21, 0
        %s242 = scalar_select %p241, %s21, 0
        %s243 = smul.addr %s242, 2
        %s244 = scalar_lea.vmem %s2, %s243
        // Predicated region
        $region33: #{tpu_custom_call.1} parent=23 // pred_check
          %p245 = pneg %p75
        $region34: #{tpu_custom_call.1} parent=23 // pred_check_branch
          %247 = sbr.rel (%p245) target = $region36
        $region35: #{tpu_custom_call.1} parent=23 // pred_region
          _
        $region36: #{tpu_custom_call.1} parent=23 // pred_fallthru
          _
        // Predicated region
        $region37: #{tpu_custom_call.1} parent=23 // pred_check
          %p248 = pneg %p101
        $region38: #{tpu_custom_call.1} parent=23 // pred_check_branch
          %250 = sbr.rel (%p248) target = $region40
        $region39: #{tpu_custom_call.1} parent=23 // pred_region
          _
        $region40: #{tpu_custom_call.1} parent=23 // pred_fallthru
          _
        // Predicated region
        $region41: #{tpu_custom_call.1} parent=23 // pred_check
          %p251 = pneg %p75
        $region42: #{tpu_custom_call.1} parent=23 // pred_check_branch
          %253 = sbr.rel (%p251) target = $region44
        $region43: #{tpu_custom_call.1} parent=23 // pred_region
          %p254 = scmp.lt.s32.totalorder %s21, 0
          %s255 = scalar_select %p254, %s21, 0
          %s256 = smul.addr %s255, 2
          %s257 = scalar_lea.vmem %s1, %s256
        $region44: #{tpu_custom_call.1} parent=23 // pred_fallthru
          _
        // Predicated region
        $region45: #{tpu_custom_call.1} parent=23 // pred_check
          %p258 = pneg %p101
        $region46: #{tpu_custom_call.1} parent=23 // pred_check_branch
          %260 = sbr.rel (%p258) target = $region48
        $region47: #{tpu_custom_call.1} parent=23 // pred_region
          %p261 = scmp.lt.s32.totalorder %s21, 0
          %s262 = scalar_select %p261, %s21, 0
          %s263 = smul.addr %s262, 2
          %s264 = scalar_lea.vmem %s2, %s263
        $region48: #{tpu_custom_call.1} parent=23 // pred_fallthru
          _
      $region24: #{tpu_custom_call.1} parent=5 // pred_fallthru
        _
      %p265 = scmp.le.s32.totalorder 2, %s12
      // Predicated region
      $region49: #{tpu_custom_call.1} parent=5 // pred_check
        %p266 = pneg %p265
      $region50: #{tpu_custom_call.1} parent=5 // pred_check_branch
        %268 = sbr.rel (%p266) target = $region52
      $region51: #{tpu_custom_call.1} parent=5 // pred_region
        %s269 = ssub.s32 %s12, 2
      $region52: #{tpu_custom_call.1} parent=5 // pred_fallthru
        _
    $region6: #{tpu_custom_call.1} parent=1 // loop_footer
      %s16 = sadd.s32 1, %s12
    $region7: #{tpu_custom_call.1} parent=1 // loop_footer_branch
      %11 = sbr.rel target = $region3
    $region8: #{tpu_custom_call.1} parent=1 // loop_exit
      _
    %270 = vsyncpa [#allocation3], 1
    %s271 = scalar_lea.sflag [#allocation3], 1
    %272 = vsyncpa %s271, 1

</llo_original>
